<compile_context>
chip_gen: v5e
topology: v5e:2x2
jax: 0.10.0
libtpu: 0.0.40
codegen_flags: <defaults>
</compile_context>

<pallas_src>
import jax
import jax.numpy as jnp
from jax.experimental import pallas as pl
from jax.experimental.pallas import tpu as pltpu


NODE_INFO_PRIMITIVES = ("identity", "zero", "linear", "mlp")

LANE = 128      # last block dim must be a multiple of the 128-wide lane axis
SUBLANE = 8     # second-to-last block dim multiple

_MIN_PALLAS_FLOPS = 1 << 24        # ~16.7 MFLOP raw: below this, launch/pad overhead dominates
_MAX_PALLAS_RESIDENT = 48 << 20    # resident bf16 weights budget (headroom under v7x 64 MiB/TC)


def _round_up(v, m):
    return (v + m - 1) // m * m


def _pad2d(a, rows, cols):
    pr, pc = rows - a.shape[0], cols - a.shape[1]
    if pr or pc:
        a = jnp.pad(a, ((0, pr), (0, pc)))
    return a


# ----------------------------- Pallas kernels -----------------------------

def _linear_kernel(x_ref, w_ref, b_ref, o_ref):
    # y = x @ W + b ; bf16 MXU operands (cast in-kernel), f32 accumulation, f32 bias on VPU.
    x = x_ref[...].astype(jnp.bfloat16)
    acc = jnp.dot(x, w_ref[...], preferred_element_type=jnp.float32)
    o_ref[...] = (acc + b_ref[...]).astype(o_ref.dtype)


def _mlp_kernel(x_ref, w1_ref, b1_ref, w2_ref, b2_ref, o_ref):
    # y = relu(x @ W1 + b1) @ W2 + b2, fused; h kept in VMEM (no HBM round-trip).
    x = x_ref[...].astype(jnp.bfloat16)
    h = jnp.dot(x, w1_ref[...], preferred_element_type=jnp.float32) + b1_ref[...]
    h = jnp.maximum(h, 0.0).astype(jnp.bfloat16)  # ReLU in f32, cast only to feed the MXU
    acc = jnp.dot(h, w2_ref[...], preferred_element_type=jnp.float32) + b2_ref[...]
    o_ref[...] = acc.astype(o_ref.dtype)


# --------------------------- pallas_call wrapper ---------------------------

def _row_tiled_call(kernel, x, weights, biases, n_matmuls):
    """Row-tiled pallas_call.  x: (N, H) in its native dtype.  weights: pre-padded (Hp, Hp) bf16.
    biases: pre-padded (1, Hp) f32.  Returns (N, H) in x.dtype."""
    n, h = x.shape
    hp = weights[0].shape[0]
    out_dtype = x.dtype
    itemsize = x.dtype.itemsize

    # Row tile: bounded padding, >= 2 grid steps so the "parallel" axis uses both v7x TCs.
    max_tile = 1024 if hp <= 1024 else 512
    n_tiles = max(2, pl.cdiv(n, max_tile))
    tile_m = _round_up(pl.cdiv(n, n_tiles), SUBLANE)
    np_rows = _round_up(n, tile_m)
    grid_m = np_rows // tile_m

    padded = (np_rows != n) or (hp != h)
    x_p = _pad2d(x, np_rows, hp) if padded else x   # native dtype; bf16 cast happens in-kernel

    x_spec = pl.BlockSpec((tile_m, hp), lambda i: (i, 0))
    # Constant index_map + single buffer: weights/biases fetched once, resident across row tiles.
    w_spec = pl.BlockSpec((hp, hp), lambda i: (0, 0), pipeline_mode=pl.Buffered(1))
    b_spec = pl.BlockSpec((1, hp), lambda i: (0, 0), pipeline_mode=pl.Buffered(1))

    in_specs, args = [x_spec], [x_p]
    for w, b in zip(weights, biases):
        in_specs += [w_spec, b_spec]
        args += [w, b]

    # Explicit VMEM budget (important on v7x: 64 MiB/TC; and v5e: 16 MiB default scoped limit).
    resident = (2 * tile_m * hp * itemsize            # double-buffered x tile
                + 2 * tile_m * hp * itemsize          # double-buffered out tile
                + sum(w.size * 2 for w in weights)    # single-buffered bf16 weights
                + sum(b.size * 4 for b in biases)     # f32 biases
                + n_matmuls * tile_m * hp * 4)        # f32 intermediates / accumulator
    vmem_limit = int(min(max(resident * 5 // 4, 16 << 20), 56 << 20))

    flops = 2 * np_rows * hp * hp * n_matmuls
    bytes_accessed = (x_p.size * itemsize
                      + sum(w.size * 2 for w in weights)
                      + sum(b.size * 4 for b in biases)
                      + np_rows * hp * itemsize)

    out = pl.pallas_call(
        kernel,
        out_shape=jax.ShapeDtypeStruct((np_rows, hp), out_dtype),
        grid=(grid_m,),
        in_specs=in_specs,
        out_specs=pl.BlockSpec((tile_m, hp), lambda i: (i, 0)),
        compiler_params=pltpu.CompilerParams(
            dimension_semantics=("parallel",),
            vmem_limit_bytes=vmem_limit),
        cost_estimate=pl.CostEstimate(
            flops=flops, transcendentals=0, bytes_accessed=bytes_accessed),
    )(*args)

    if padded:
        out = out[:n, :h]
    return out


def _use_pallas(n, h, weights, n_matmuls):
    # Gate tiny problems (launch/pad overhead dominates) and huge resident weights (VMEM) to XLA.
    flops = 2 * n * h * h * n_matmuls
    resident = sum(w.size * 2 for w in weights)
    return flops >= _MIN_PALLAS_FLOPS and resident <= _MAX_PALLAS_RESIDENT


# --------------------------------- ops --------------------------------------

def identity_op(x, params):
    # No kernel: a Pallas identity would pay a full HBM read+write for zero compute.
    return x


def zero_op(x, params):
    # No kernel: no input DMA, no grid-step overhead.
    return jnp.zeros_like(x)


def linear_op(x, params):
    n, h = x.shape
    if _use_pallas(n, h, (params["w_p"],), 1):
        return _row_tiled_call(_linear_kernel, x, (params["w_p"],), (params["b_p"],), 1)
    # small / oversized shapes: plain XLA matmul (f32), no Pallas overhead
    return (x @ params["w"] + params["b"]).astype(x.dtype)


def mlp_op(x, params):
    n, h = x.shape
    ws = (params["w1_p"], params["w2_p"])
    if _use_pallas(n, h, ws, 2):
        return _row_tiled_call(
            _mlp_kernel, x, ws, (params["b1_p"], params["b2_p"]), 2)
    h1 = jnp.maximum(x @ params["w1"] + params["b1"], 0.0)
    return (h1 @ params["w2"] + params["b2"]).astype(x.dtype)


_OP_FNS = {
    "identity": identity_op,
    "zero": zero_op,
    "linear": linear_op,
    "mlp": mlp_op,
}


# ------------------------------ module port --------------------------------

class NodeInfoOpBlock:
    """JAX/Pallas port of NodeInfoOpBlock: builds one op per primitive, forward dispatches."""

    def __init__(self, hidden_dim, ent_num, key):
        self.hidden_dim = hidden_dim
        self.ent_num = ent_num  # kept for signature parity (unused by representative ops)
        hp = _round_up(hidden_dim, LANE)
        self._hp = hp

        k1, k2, k3 = jax.random.split(key, 3)
        scale = 1.0 / jnp.sqrt(hidden_dim)

        def make_lin(k):
            w = jax.random.normal(k, (hidden_dim, hidden_dim), jnp.float32) * scale
            b = jnp.zeros((1, hidden_dim), jnp.float32)
            return w, b

        w, b = make_lin(k1)
        w1, b1 = make_lin(k2)
        w2, b2 = make_lin(k3)

        # Zero-padded to lane-dense (Hp, Hp); padded rows/cols contribute exactly 0 to the math.
        def pad_w(a):
            return _pad2d(a, hp, hp).astype(jnp.bfloat16)

        def pad_b(a):
            return _pad2d(a, 1, hp)  # bias stays f32

        self.params = {
            "identity": {},
            "zero": {},
            "linear": {"w": w, "b": b, "w_p": pad_w(w), "b_p": pad_b(b)},
            "mlp": {"w1": w1, "b1": b1, "w2": w2, "b2": b2,
                    "w1_p": pad_w(w1), "b1_p": pad_b(b1),
                    "w2_p": pad_w(w2), "b2_p": pad_b(b2)},
        }

    def __call__(self, node_info_embed, primitive):
        idx = NODE_INFO_PRIMITIVES.index(primitive)  # same dispatch semantics as the torch module
        prim = NODE_INFO_PRIMITIVES[idx]
        return _OP_FNS[prim](node_info_embed, self.params[prim])


# ---------------------------------- main ------------------------------------

if __name__ == "__main__":
    ent_num = 16
    key = jax.random.PRNGKey(0)
    k_xs, k_xb, k_ps, k_pb = jax.random.split(key, 4)

    def q(a):  # bf16 quantization matching the Pallas MXU operand cast
        return a.astype(jnp.bfloat16).astype(jnp.float32)

    # --- 1) module-typical small shapes: gated to plain XLA (Pallas would be pure overhead) ---
    hidden_s, batch_s = 32, 8
    xs = jax.random.normal(k_xs, (batch_s, hidden_s), jnp.float32)
    blk_s = NodeInfoOpBlock(hidden_s, ent_num, k_ps)
    outs_s = {p: jax.block_until_ready(blk_s(xs, p)) for p in NODE_INFO_PRIMITIVES}

    ps_lin, ps_mlp = blk_s.params["linear"], blk_s.params["mlp"]
    ref_s_lin = xs @ ps_lin["w"] + ps_lin["b"]
    hs = jnp.maximum(xs @ ps_mlp["w1"] + ps_mlp["b1"], 0.0)
    ref_s_mlp = hs @ ps_mlp["w2"] + ps_mlp["b2"]

    assert jnp.allclose(outs_s["identity"], xs)
    assert jnp.allclose(outs_s["zero"], jnp.zeros_like(xs))
    assert jnp.allclose(outs_s["linear"], ref_s_lin, atol=1e-5, rtol=1e-5)
    assert jnp.allclose(outs_s["mlp"], ref_s_mlp, atol=1e-5, rtol=1e-5)

    # --- 2) shapes above the gate: exercises the Pallas TPU kernels ---
    hidden_b, batch_b = 256, 512
    xb = jax.random.normal(k_xb, (batch_b, hidden_b), jnp.float32)
    blk_b = NodeInfoOpBlock(hidden_b, ent_num, k_pb)
    outs_b = {p: jax.block_until_ready(blk_b(xb, p)) for p in NODE_INFO_PRIMITIVES}

    pb_lin, pb_mlp = blk_b.params["linear"], blk_b.params["mlp"]
    ref_b_lin = q(xb) @ q(pb_lin["w"]) + pb_lin["b"]
    hb = jnp.maximum(q(xb) @ q(pb_mlp["w1"]) + pb_mlp["b1"], 0.0)
    ref_b_mlp = q(hb) @ q(pb_mlp["w2"]) + pb_mlp["b2"]

    assert jnp.allclose(outs_b["identity"], xb)
    assert jnp.allclose(outs_b["zero"], jnp.zeros_like(xb))
    assert jnp.allclose(outs_b["linear"], ref_b_lin, atol=1e-2, rtol=1e-2)
    assert jnp.allclose(outs_b["mlp"], ref_b_mlp, atol=1e-2, rtol=1e-2)

    print("KERNEL_OK")
</pallas_src>

<mosaic_0001>
module attributes {stable_mosaic.version = 11 : i64} {
  func.func @_linear_kernel(%arg0: i32, %arg1: memref<256x256xf32, #tpu.memory_space<vmem>>, %arg2: memref<256x256xbf16, #tpu.memory_space<vmem>>, %arg3: memref<1x256xf32, #tpu.memory_space<vmem>>, %arg4: memref<256x256xf32, #tpu.memory_space<vmem>>) attributes {dimension_semantics = [#tpu.dimension_semantics<parallel>], iteration_bounds = array<i64: 2>, scalar_prefetch = 0 : i64, scratch_operands = 0 : i64, tpu.core_type = #tpu.core_type<tc>, window_params = [{transform_indices = @transform_0, window_bounds = array<i64: 256, 256>}, {pipeline_mode = #tpu.pipeline_mode<synchronous>, transform_indices = @transform_1, window_bounds = array<i64: 256, 256>}, {pipeline_mode = #tpu.pipeline_mode<synchronous>, transform_indices = @transform_2, window_bounds = array<i64: 1, 256>}, {transform_indices = @transform_3, window_bounds = array<i64: 256, 256>}]} {
    %c0 = arith.constant 0 : index
    %c0_0 = arith.constant 0 : index
    %0 = vector.load %arg1[%c0, %c0_0] : memref<256x256xf32, #tpu.memory_space<vmem>>, vector<256x256xf32>
    %1 = arith.truncf %0 : vector<256x256xf32> to vector<256x256xbf16>
    %c0_1 = arith.constant 0 : index
    %c0_2 = arith.constant 0 : index
    %2 = vector.load %arg2[%c0_1, %c0_2] : memref<256x256xbf16, #tpu.memory_space<vmem>>, vector<256x256xbf16>
    %cst = arith.constant dense<0.000000e+00> : vector<256x256xf32>
    %3 = tpu.matmul %1, %2, %cst {dimension_numbers = #tpu.dot_dimension_numbers<[1], [0], [0], [1], [0, 0, 1, 1], [], []>} : vector<256x256xbf16>, vector<256x256xbf16>, vector<256x256xf32> -> vector<256x256xf32>
    %c0_3 = arith.constant 0 : index
    %c0_4 = arith.constant 0 : index
    %4 = vector.load %arg3[%c0_3, %c0_4] : memref<1x256xf32, #tpu.memory_space<vmem>>, vector<1x256xf32>
    %5 = vector.broadcast %4 : vector<1x256xf32> to vector<256x256xf32>
    %6 = arith.addf %3, %5 : vector<256x256xf32>
    %c0_5 = arith.constant 0 : index
    %c0_6 = arith.constant 0 : index
    %7 = vector.load %arg4[%c0_5, %c0_6] : memref<256x256xf32, #tpu.memory_space<vmem>>, vector<256x256xf32>
    tpu.vector_store %arg4[%c0_5, %c0_6], %6 {strides = array<i32>} : memref<256x256xf32, #tpu.memory_space<vmem>>, vector<256x256xf32>,
    return
  }
  func.func @transform_0(%arg0: i32) -> (i32, i32) {
    %c0_i32 = arith.constant 0 : i32
    %c0_i32_0 = arith.constant 0 : i32
    return %arg0, %c0_i32 : i32, i32
  }
  func.func @transform_1(%arg0: i32) -> (i32, i32) {
    %c0_i32 = arith.constant 0 : i32
    %c0_i32_0 = arith.constant 0 : i32
    %c0_i32_1 = arith.constant 0 : i32
    return %c0_i32, %c0_i32_0 : i32, i32
  }
  func.func @transform_2(%arg0: i32) -> (i32, i32) {
    %c0_i32 = arith.constant 0 : i32
    %c0_i32_0 = arith.constant 0 : i32
    %c0_i32_1 = arith.constant 0 : i32
    return %c0_i32, %c0_i32_0 : i32, i32
  }
  func.func @transform_3(%arg0: i32) -> (i32, i32) {
    %c0_i32 = arith.constant 0 : i32
    %c0_i32_0 = arith.constant 0 : i32
    return %arg0, %c0_i32 : i32, i32
  }
}

</mosaic_0001>

<llo_original>
// kernel: tpu_custom_call.1
$region0: #{tpu_custom_call.1}
  #allocation0 [shape = 'u32[]', space=smem, size = 0x4, offset = 0x4, fixed_abs, tag = 'smem constant byte address 0x4 - core index']
  #allocation1 [shape = 'u32[72,128]{1,0:T(1,128)}', space=vmem, size = 0x9000, scoped, tag = 'internal scratch']
  %s0 = inlined_call_operand.hbm [shape: f32[512,256], index: 0, kind: input, shape index: {}]
  %s1 = inlined_call_operand.hbm [shape: bf16[256,256], index: 1, kind: input, shape index: {}]
  %s2 = inlined_call_operand.hbm [shape: f32[1,256], index: 2, kind: input, shape index: {}]
  %s3 = inlined_call_operand.hbm [shape: f32[512,256], index: 3, kind: output, shape index: {}]
  %s4 = sld [smem:[#allocation0]]
  $region57: #{tpu_custom_call.1} parent=0
    _
  %s6 = ssub.s32 1, %s4
  %s7 = scalar_select 0, %s6, %s4
  $region1: #{tpu_custom_call.1} parent=0
    #allocation2 [shape = 'u8[524288]{0}', space=vmem, size = 0x80000, scoped, tag = 'input window, operand 0']
    #allocation3 [shape = 's32[2]{0}', space=sflag, size = 0x8, scoped, tag = 'scoped memory for tpu_custom_call.1']
    #allocation4 [shape = 's32[2]{0}', space=sflag, size = 0x8, scoped, tag = 'scoped memory for tpu_custom_call.1']
    #allocation5 [shape = 'u8[131072]{0}', space=vmem, size = 0x20000, scoped, tag = 'input window, operand 1, single buffered']
    #allocation6 [shape = 's32[1]{0}', space=sflag, size = 0x4, scoped, tag = 'scoped memory for tpu_custom_call.1']
    #allocation7 [shape = 'u8[1024]{0}', space=vmem, size = 0x400, scoped, tag = 'input window, operand 2, single buffered']
    #allocation8 [shape = 'u8[524288]{0}', space=vmem, size = 0x80000, scoped, tag = 'output window, operand 0']
    %8 = vsyncpa [#allocation3], 0
    %s9 = scalar_lea.sflag [#allocation3], 1
    %10 = vsyncpa %s9, 0
    %11 = vsyncpa [#allocation6], 0
    %12 = vsyncpa [#allocation4], 0
    %s13 = scalar_lea.sflag [#allocation4], 1
    %14 = vsyncpa %s13, 0
    loop: start=0, step=1, limit=4
    $region2: #{tpu_custom_call.1} parent=1 // loop_pre_header
      _
    $region3: #{tpu_custom_call.1} parent=1 // loop_header
      %s16 = sphi 0, %s20
      %p17 = scmp.ge.s32.totalorder %s16, 4
      %s26 = sphi 0, %s28
      %s29 = sphi 0, %s26
      %s30 = sphi 0, %s29
      %s46 = sphi 0, %s30
      %s50 = sphi 0, %s50
      %s52 = sphi 0, %s50
      %s53 = sphi 0, %s52
      %s67 = sphi 0, %s53
      %s71 = sphi 0, %s71
      %s73 = sphi 0, %s71
      %s74 = sphi 0, %s73
      %s88 = sphi 0, %s74
      %s94 = sphi 0, %s96
      %s97 = sphi 0, %s94
      %s98 = sphi 0, %s97
      %s114 = sphi 0, %s98
    $region4: #{tpu_custom_call.1} parent=1 // loop_header_branch
      %19 = sbr.rel (%p17) target = $region8
    $region5: #{tpu_custom_call.1} parent=1 // loop_body
      %s21 = ssub.s32 %s16, 1
      %s22 = ssub.s32 %s16, 2
      %s23 = sadd.s32 %s16, 1
      %s24 = ssub.s32 %s16, %s23
      %p25 = scmp.eq.s32.totalorder %s24, 0
      %s27 = sadd.s32 %s26, 1
      %s28 = scalar_select %p25, %s26, %s27
      %p31 = pneg %p25
      %p32 = scmp.eq.s32.totalorder %s16, 1
      %p33 = por %p31, %p32
      %p34 = scmp.ne.s32.totalorder %s26, %s29
      %p35 = scmp.eq.s32.totalorder %s16, 0
      %p36 = por %p34, %p35
      %p37 = scmp.ne.s32.totalorder %s26, %s29
      %p38 = scmp.eq.s32.totalorder %s21, 1
      %p39 = por %p37, %p38
      %p40 = scmp.ne.s32.totalorder %s29, %s30
      %p41 = scmp.eq.s32.totalorder %s21, 0
      %p42 = por %p40, %p41
      %p43 = scmp.ne.s32.totalorder %s29, %s30
      %p44 = scmp.eq.s32.totalorder %s22, 1
      %p45 = por %p43, %p44
      %p47 = scmp.ne.s32.totalorder %s30, %s46
      %p48 = scmp.eq.s32.totalorder %s22, 0
      %p49 = por %p47, %p48
      %s51 = sadd.s32 %s50, 1
      %p54 = scmp.eq.s32.totalorder %s16, 1
      %p55 = scmp.ne.s32.totalorder %s50, %s52
      %p56 = scmp.eq.s32.totalorder %s16, 0
      %p57 = por %p55, %p56
      %p58 = scmp.ne.s32.totalorder %s50, %s52
      %p59 = scmp.eq.s32.totalorder %s21, 1
      %p60 = por %p58, %p59
      %p61 = scmp.ne.s32.totalorder %s52, %s53
      %p62 = scmp.eq.s32.totalorder %s21, 0
      %p63 = por %p61, %p62
      %p64 = scmp.ne.s32.totalorder %s52, %s53
      %p65 = scmp.eq.s32.totalorder %s22, 1
      %p66 = por %p64, %p65
      %p68 = scmp.ne.s32.totalorder %s53, %s67
      %p69 = scmp.eq.s32.totalorder %s22, 0
      %p70 = por %p68, %p69
      %s72 = sadd.s32 %s71, 1
      %p75 = scmp.eq.s32.totalorder %s16, 1
      %p76 = scmp.ne.s32.totalorder %s71, %s73
      %p77 = scmp.eq.s32.totalorder %s16, 0
      %p78 = por %p76, %p77
      %p79 = scmp.ne.s32.totalorder %s71, %s73
      %p80 = scmp.eq.s32.totalorder %s21, 1
      %p81 = por %p79, %p80
      %p82 = scmp.ne.s32.totalorder %s73, %s74
      %p83 = scmp.eq.s32.totalorder %s21, 0
      %p84 = por %p82, %p83
      %p85 = scmp.ne.s32.totalorder %s73, %s74
      %p86 = scmp.eq.s32.totalorder %s22, 1
      %p87 = por %p85, %p86
      %p89 = scmp.ne.s32.totalorder %s74, %s88
      %p90 = scmp.eq.s32.totalorder %s22, 0
      %p91 = por %p89, %p90
      %s92 = ssub.s32 %s16, %s23
      %p93 = scmp.eq.s32.totalorder %s92, 0
      %s95 = sadd.s32 %s94, 1
      %s96 = scalar_select %p93, %s94, %s95
      %p99 = pneg %p93
      %p100 = scmp.eq.s32.totalorder %s16, 1
      %p101 = por %p99, %p100
      %p102 = scmp.ne.s32.totalorder %s94, %s97
      %p103 = scmp.eq.s32.totalorder %s16, 0
      %p104 = por %p102, %p103
      %p105 = scmp.ne.s32.totalorder %s94, %s97
      %p106 = scmp.eq.s32.totalorder %s21, 1
      %p107 = por %p105, %p106
      %p108 = scmp.ne.s32.totalorder %s97, %s98
      %p109 = scmp.eq.s32.totalorder %s21, 0
      %p110 = por %p108, %p109
      %p111 = scmp.ne.s32.totalorder %s97, %s98
      %p112 = scmp.eq.s32.totalorder %s22, 1
      %p113 = por %p111, %p112
      %p115 = scmp.ne.s32.totalorder %s98, %s114
      %p116 = scmp.eq.s32.totalorder %s22, 0
      %p117 = por %p115, %p116
      %p118 = scmp.le.s32.totalorder 1, %s16
      %p119 = scmp.lt.s32.totalorder %s16, 3
      %p120 = pnand %p118, %p119
      %p121 = pneg %p120
      // Predicated region
      $region9: #{tpu_custom_call.1} parent=5 // pred_check
        _
      $region10: #{tpu_custom_call.1} parent=5 // pred_check_branch
        %123 = sbr.rel (%p120) target = $region12
      $region11: #{tpu_custom_call.1} parent=5 // pred_region
        %s124 = ssub.s32 %s16, 1
        // Predicated region
        $region13: #{tpu_custom_call.1} parent=11 // pred_check
          %p125 = pneg %p63
        $region14: #{tpu_custom_call.1} parent=11 // pred_check_branch
          %127 = sbr.rel (%p125) target = $region16
        $region15: #{tpu_custom_call.1} parent=11 // pred_region
          %129 = vsyncadd [#allocation6], 0
          %s130 = sshll.u32 %s1, 4
          %s131 = int_to_ptr.hbm [resolvable:$true] %s130
          %s132 = sshll.u32 [#allocation5], 4
          %s133 = int_to_ptr.vmem [resolvable:$true] %s132
          %138 = dma.hbm_to_vmem [thread:$0]  %s131, 4096, %s133, [#allocation6], 128, 128, 8
        $region16: #{tpu_custom_call.1} parent=11 // pred_fallthru
          _
        // Predicated region
        $region17: #{tpu_custom_call.1} parent=11 // pred_check
          %p139 = pneg %p84
        $region18: #{tpu_custom_call.1} parent=11 // pred_check_branch
          %141 = sbr.rel (%p139) target = $region20
        $region19: #{tpu_custom_call.1} parent=11 // pred_region
          %143 = vsyncadd [#allocation6], 0
          %s145 = sshll.u32 %s2, 4
          %s146 = int_to_ptr.hbm [resolvable:$true] %s145
          %s147 = sshll.u32 [#allocation7], 4
          %s148 = int_to_ptr.vmem [resolvable:$true] %s147
          %150 = dma.hbm_to_vmem [thread:$0]  %s146, 32, %s148, [#allocation6]
        $region20: #{tpu_custom_call.1} parent=11 // pred_fallthru
          _
      $region12: #{tpu_custom_call.1} parent=5 // pred_fallthru
        _
      %p151 = scmp.lt.s32.totalorder %s16, 2
      // Predicated region
      $region21: #{tpu_custom_call.1} parent=5 // pred_check
        %p152 = pneg %p151
      $region22: #{tpu_custom_call.1} parent=5 // pred_check_branch
        %154 = sbr.rel (%p152) target = $region24
      $region23: #{tpu_custom_call.1} parent=5 // pred_region
        // Predicated region
        $region25: #{tpu_custom_call.1} parent=23 // pred_check
          %p155 = pneg %p36
        $region26: #{tpu_custom_call.1} parent=23 // pred_check_branch
          %157 = sbr.rel (%p155) target = $region28
        $region27: #{tpu_custom_call.1} parent=23 // pred_region
          %s158 = sand.u32 %s26, 1
          %s159 = scalar_lea.sflag [#allocation3], %s158
          %s160 = sand.u32 %s26, 1
          %s161 = smul.addr %s160, 512
          %s162 = scalar_lea.vmem [#allocation2], %s161
          %s163 = smul.u32 32, %s16
          %165 = vsyncadd %s159, 0
          %s166 = smul.addr %s163, 2
          %s167 = smul.addr %s166, 8
          %s168 = scalar_lea.hbm %s0, %s167
          %s169 = sshll.u32 %s168, 4
          %s170 = int_to_ptr.hbm [resolvable:$true] %s169
          %s171 = sshll.u32 %s162, 4
          %s172 = int_to_ptr.vmem [resolvable:$true] %s171
          %177 = dma.hbm_to_vmem [thread:$0]  %s170, 8192, %s172, %s159, 256, 256, 16
        $region28: #{tpu_custom_call.1} parent=23 // pred_fallthru
          _
      $region24: #{tpu_custom_call.1} parent=5 // pred_fallthru
        _
      %p178 = scmp.le.s32.totalorder 1, %s16
      %p179 = scmp.lt.s32.totalorder %s16, 3
      %p180 = pnand %p178, %p179
      %p181 = pneg %p180
      // Predicated region
      $region29: #{tpu_custom_call.1} parent=5 // pred_check
        _
      $region30: #{tpu_custom_call.1} parent=5 // pred_check_branch
        %183 = sbr.rel (%p180) target = $region32
      $region31: #{tpu_custom_call.1} parent=5 // pred_region
        %s184 = ssub.s32 %s16, 1
        %s185 = sand.u32 %s29, 1
        %s186 = scalar_lea.sflag [#allocation3], %s185
        %s187 = sand.u32 %s29, 1
        %s188 = smul.addr %s187, 512
        %s189 = scalar_lea.vmem [#allocation2], %s188
        // Predicated region
        $region33: #{tpu_custom_call.1} parent=31 // pred_check
          %p190 = pneg %p42
        $region34: #{tpu_custom_call.1} parent=31 // pred_check_branch
          %192 = sbr.rel (%p190) target = $region36
        $region35: #{tpu_custom_call.1} parent=31 // pred_region
          %194 = dma.done %s186, 8192
        $region36: #{tpu_custom_call.1} parent=31 // pred_fallthru
          _
        // Predicated region
        $region37: #{tpu_custom_call.1} parent=31 // pred_check
          %p195 = pneg %p63
        $region38: #{tpu_custom_call.1} parent=31 // pred_check_branch
          %197 = sbr.rel (%p195) target = $region40
        $region39: #{tpu_custom_call.1} parent=31 // pred_region
          %199 = dma.done [#allocation6], 4096
        $region40: #{tpu_custom_call.1} parent=31 // pred_fallthru
          _
        // Predicated region
        $region41: #{tpu_custom_call.1} parent=31 // pred_check
          %p200 = pneg %p84
        $region42: #{tpu_custom_call.1} parent=31 // pred_check_branch
          %202 = sbr.rel (%p200) target = $region44
        $region43: #{tpu_custom_call.1} parent=31 // pred_region
          %204 = dma.done [#allocation6], 32
        $region44: #{tpu_custom_call.1} parent=31 // pred_fallthru
          _
        %s205 = sand.u32 %s29, 1
        %s206 = scalar_lea.sflag [#allocation3], %s205
        %s207 = sand.u32 %s29, 1
        %s208 = smul.addr %s207, 512
        %s209 = scalar_lea.vmem [#allocation2], %s208
        %p210 = pneg %p42
        %p211 = pneg %p39
        %p212 = pneg %p63
        %p213 = pneg %p60
        %p214 = pneg %p84
        %p215 = pneg %p81
        %p216 = pneg %p110
        %p217 = pneg %p107
        %s218 = sand.u32 %s97, 1
        %s219 = scalar_lea.sflag [#allocation4], %s218
        %s220 = sand.u32 %s97, 1
        %s221 = smul.addr %s220, 512
        %s222 = scalar_lea.vmem [#allocation8], %s221
        %s223 = smul.u32 32, %s21
        %s224 = smul.u32 32, %s21
        %v225 = vld [vmem:[%s189] sm:$0xff]
        %v226 = vld [vmem:[%s189 + $0x8] sm:$0xff]
        %v227 = vld [vmem:[%s189 + $0x10] sm:$0xff]
        %v228 = vld [vmem:[%s189 + $0x18] sm:$0xff]
        %v229 = vld [vmem:[%s189 + $0x20] sm:$0xff]
        %v230 = vld [vmem:[%s189 + $0x28] sm:$0xff]
        %v231 = vld [vmem:[%s189 + $0x30] sm:$0xff]
        %v232 = vld [vmem:[%s189 + $0x38] sm:$0xff]
        %v233 = vld [vmem:[%s189 + $0x40] sm:$0xff]
        %v234 = vld [vmem:[%s189 + $0x48] sm:$0xff]
        %v235 = vld [vmem:[%s189 + $0x50] sm:$0xff]
        %v236 = vld [vmem:[%s189 + $0x58] sm:$0xff]
        %v237 = vld [vmem:[%s189 + $0x60] sm:$0xff]
        %v238 = vld [vmem:[%s189 + $0x68] sm:$0xff]
        %v239 = vld [vmem:[%s189 + $0x70] sm:$0xff]
        %v240 = vld [vmem:[%s189 + $0x78] sm:$0xff]
        %v241 = vld [vmem:[%s189 + $0x80] sm:$0xff]
        %v242 = vld [vmem:[%s189 + $0x88] sm:$0xff]
        %v243 = vld [vmem:[%s189 + $0x90] sm:$0xff]
        %v244 = vld [vmem:[%s189 + $0x98] sm:$0xff]
        %v245 = vld [vmem:[%s189 + $0xa0] sm:$0xff]
        %v246 = vld [vmem:[%s189 + $0xa8] sm:$0xff]
        %v247 = vld [vmem:[%s189 + $0xb0] sm:$0xff]
        %v248 = vld [vmem:[%s189 + $0xb8] sm:$0xff]
        %v249 = vld [vmem:[%s189 + $0xc0] sm:$0xff]
        %v250 = vld [vmem:[%s189 + $0xc8] sm:$0xff]
        %v251 = vld [vmem:[%s189 + $0xd0] sm:$0xff]
        %v252 = vld [vmem:[%s189 + $0xd8] sm:$0xff]
        %v253 = vld [vmem:[%s189 + $0xe0] sm:$0xff]
        %v254 = vld [vmem:[%s189 + $0xe8] sm:$0xff]
        %v255 = vld [vmem:[%s189 + $0xf0] sm:$0xff]
        %v256 = vld [vmem:[%s189 + $0xf8] sm:$0xff]
        %v257 = vld [vmem:[%s189 + $0x100] sm:$0xff]
        %v258 = vld [vmem:[%s189 + $0x108] sm:$0xff]
        %v259 = vld [vmem:[%s189 + $0x110] sm:$0xff]
        %v260 = vld [vmem:[%s189 + $0x118] sm:$0xff]
        %v261 = vld [vmem:[%s189 + $0x120] sm:$0xff]
        %v262 = vld [vmem:[%s189 + $0x128] sm:$0xff]
        %v263 = vld [vmem:[%s189 + $0x130] sm:$0xff]
        %v264 = vld [vmem:[%s189 + $0x138] sm:$0xff]
        %v265 = vld [vmem:[%s189 + $0x140] sm:$0xff]
        %v266 = vld [vmem:[%s189 + $0x148] sm:$0xff]
        %v267 = vld [vmem:[%s189 + $0x150] sm:$0xff]
        %v268 = vld [vmem:[%s189 + $0x158] sm:$0xff]
        %v269 = vld [vmem:[%s189 + $0x160] sm:$0xff]
        %v270 = vld [vmem:[%s189 + $0x168] sm:$0xff]
        %v271 = vld [vmem:[%s189 + $0x170] sm:$0xff]
        %v272 = vld [vmem:[%s189 + $0x178] sm:$0xff]
        %v273 = vld [vmem:[%s189 + $0x180] sm:$0xff]
        %v274 = vld [vmem:[%s189 + $0x188] sm:$0xff]
        %v275 = vld [vmem:[%s189 + $0x190] sm:$0xff]
        %v276 = vld [vmem:[%s189 + $0x198] sm:$0xff]
        %v277 = vld [vmem:[%s189 + $0x1a0] sm:$0xff]
        %v278 = vld [vmem:[%s189 + $0x1a8] sm:$0xff]
        %v279 = vld [vmem:[%s189 + $0x1b0] sm:$0xff]
        %v280 = vld [vmem:[%s189 + $0x1b8] sm:$0xff]
        %v281 = vld [vmem:[%s189 + $0x1c0] sm:$0xff]
        %v282 = vld [vmem:[%s189 + $0x1c8] sm:$0xff]
        %v283 = vld [vmem:[%s189 + $0x1d0] sm:$0xff]
        %v284 = vld [vmem:[%s189 + $0x1d8] sm:$0xff]
        %v285 = vld [vmem:[%s189 + $0x1e0] sm:$0xff]
        %v286 = vld [vmem:[%s189 + $0x1e8] sm:$0xff]
        %v287 = vld [vmem:[%s189 + $0x1f0] sm:$0xff]
        %v288 = vld [vmem:[%s189 + $0x1f8] sm:$0xff]
        %v289 = vpack.c.bf16 %v227, %v225
        %v290 = vpack.c.bf16 %v228, %v226
        %v291 = vpack.c.bf16 %v231, %v229
        %v292 = vpack.c.bf16 %v232, %v230
        %v293 = vpack.c.bf16 %v235, %v233
        %v294 = vpack.c.bf16 %v236, %v234
        %v295 = vpack.c.bf16 %v239, %v237
        %v296 = vpack.c.bf16 %v240, %v238
        %v297 = vpack.c.bf16 %v243, %v241
        %v298 = vpack.c.bf16 %v244, %v242
        %v299 = vpack.c.bf16 %v247, %v245
        %v300 = vpack.c.bf16 %v248, %v246
        %v301 = vpack.c.bf16 %v251, %v249
        %v302 = vpack.c.bf16 %v252, %v250
        %v303 = vpack.c.bf16 %v255, %v253
        %v304 = vpack.c.bf16 %v256, %v254
        %v305 = vpack.c.bf16 %v259, %v257
        %v306 = vpack.c.bf16 %v260, %v258
        %v307 = vpack.c.bf16 %v263, %v261
        %v308 = vpack.c.bf16 %v264, %v262
        %v309 = vpack.c.bf16 %v267, %v265
        %v310 = vpack.c.bf16 %v268, %v266
        %v311 = vpack.c.bf16 %v271, %v269
        %v312 = vpack.c.bf16 %v272, %v270
        %v313 = vpack.c.bf16 %v275, %v273
        %v314 = vpack.c.bf16 %v276, %v274
        %v315 = vpack.c.bf16 %v279, %v277
        %v316 = vpack.c.bf16 %v280, %v278
        %v317 = vpack.c.bf16 %v283, %v281
        %v318 = vpack.c.bf16 %v284, %v282
        %v319 = vpack.c.bf16 %v287, %v285
        %v320 = vpack.c.bf16 %v288, %v286
        %v321 = vld [vmem:[#allocation5] sm:$0xff]
        %v322 = vld [vmem:[#allocation5 + $0x8] sm:$0xff]
        %v323 = vld [vmem:[#allocation5 + $0x10] sm:$0xff]
        %v324 = vld [vmem:[#allocation5 + $0x18] sm:$0xff]
        %v325 = vld [vmem:[#allocation5 + $0x20] sm:$0xff]
        %v326 = vld [vmem:[#allocation5 + $0x28] sm:$0xff]
        %v327 = vld [vmem:[#allocation5 + $0x30] sm:$0xff]
        %v328 = vld [vmem:[#allocation5 + $0x38] sm:$0xff]
        %v329 = vld [vmem:[#allocation5 + $0x40] sm:$0xff]
        %v330 = vld [vmem:[#allocation5 + $0x48] sm:$0xff]
        %v331 = vld [vmem:[#allocation5 + $0x50] sm:$0xff]
        %v332 = vld [vmem:[#allocation5 + $0x58] sm:$0xff]
        %v333 = vld [vmem:[#allocation5 + $0x60] sm:$0xff]
        %v334 = vld [vmem:[#allocation5 + $0x68] sm:$0xff]
        %v335 = vld [vmem:[#allocation5 + $0x70] sm:$0xff]
        %v336 = vld [vmem:[#allocation5 + $0x78] sm:$0xff]
        %v337 = vld [vmem:[#allocation5 + $0x80] sm:$0xff]
        %v338 = vld [vmem:[#allocation5 + $0x88] sm:$0xff]
        %v339 = vld [vmem:[#allocation5 + $0x90] sm:$0xff]
        %v340 = vld [vmem:[#allocation5 + $0x98] sm:$0xff]
        %v341 = vld [vmem:[#allocation5 + $0xa0] sm:$0xff]
        %v342 = vld [vmem:[#allocation5 + $0xa8] sm:$0xff]
        %v343 = vld [vmem:[#allocation5 + $0xb0] sm:$0xff]
        %v344 = vld [vmem:[#allocation5 + $0xb8] sm:$0xff]
        %v345 = vld [vmem:[#allocation5 + $0xc0] sm:$0xff]
        %v346 = vld [vmem:[#allocation5 + $0xc8] sm:$0xff]
        %v347 = vld [vmem:[#allocation5 + $0xd0] sm:$0xff]
        %v348 = vld [vmem:[#allocation5 + $0xd8] sm:$0xff]
        %v349 = vld [vmem:[#allocation5 + $0xe0] sm:$0xff]
        %v350 = vld [vmem:[#allocation5 + $0xe8] sm:$0xff]
        %v351 = vld [vmem:[#allocation5 + $0xf0] sm:$0xff]
        %v352 = vld [vmem:[#allocation5 + $0xf8] sm:$0xff]
        %v353 = vld [vmem:[#allocation7] sm:$0x3]
        %v355 = vperm.slane %v353, 0
        %v356 = vperm.slane %v353, 1
        %v391 = vunpack.c.l.b16 %v321
        %v392 = vunpack.c.h.b16 %v321
        %v393 = vunpack.c.l.b16 %v322
        %v394 = vunpack.c.h.b16 %v322
        %v395 = vunpack.c.l.b16 %v323
        %v396 = vunpack.c.h.b16 %v323
        %v397 = vunpack.c.l.b16 %v324
        %v398 = vunpack.c.h.b16 %v324
        %v399 = vunpack.c.l.b16 %v325
        %v400 = vunpack.c.h.b16 %v325
        %v401 = vunpack.c.l.b16 %v326
        %v402 = vunpack.c.h.b16 %v326
        %v403 = vunpack.c.l.b16 %v327
        %v404 = vunpack.c.h.b16 %v327
        %v405 = vunpack.c.l.b16 %v328
        %v406 = vunpack.c.h.b16 %v328
        %v407 = vunpack.c.l.b16 %v329
        %v408 = vunpack.c.h.b16 %v329
        %v409 = vunpack.c.l.b16 %v330
        %v410 = vunpack.c.h.b16 %v330
        %v411 = vunpack.c.l.b16 %v331
        %v412 = vunpack.c.h.b16 %v331
        %v413 = vunpack.c.l.b16 %v332
        %v414 = vunpack.c.h.b16 %v332
        %v415 = vunpack.c.l.b16 %v333
        %v416 = vunpack.c.h.b16 %v333
        %v417 = vunpack.c.l.b16 %v334
        %v418 = vunpack.c.h.b16 %v334
        %v419 = vunpack.c.l.b16 %v335
        %v420 = vunpack.c.h.b16 %v335
        %v421 = vunpack.c.l.b16 %v336
        %v422 = vunpack.c.h.b16 %v336
        %v423 = vunpack.c.l.b16 %v337
        %v424 = vunpack.c.h.b16 %v337
        %v425 = vunpack.c.l.b16 %v338
        %v426 = vunpack.c.h.b16 %v338
        %v427 = vunpack.c.l.b16 %v339
        %v428 = vunpack.c.h.b16 %v339
        %v429 = vunpack.c.l.b16 %v340
        %v430 = vunpack.c.h.b16 %v340
        %v431 = vunpack.c.l.b16 %v341
        %v432 = vunpack.c.h.b16 %v341
        %v433 = vunpack.c.l.b16 %v342
        %v434 = vunpack.c.h.b16 %v342
        %v435 = vunpack.c.l.b16 %v343
        %v436 = vunpack.c.h.b16 %v343
        %v437 = vunpack.c.l.b16 %v344
        %v438 = vunpack.c.h.b16 %v344
        %v439 = vunpack.c.l.b16 %v345
        %v440 = vunpack.c.h.b16 %v345
        %v441 = vunpack.c.l.b16 %v346
        %v442 = vunpack.c.h.b16 %v346
        %v443 = vunpack.c.l.b16 %v347
        %v444 = vunpack.c.h.b16 %v347
        %v445 = vunpack.c.l.b16 %v348
        %v446 = vunpack.c.h.b16 %v348
        %v447 = vunpack.c.l.b16 %v349
        %v448 = vunpack.c.h.b16 %v349
        %v449 = vunpack.c.l.b16 %v350
        %v450 = vunpack.c.h.b16 %v350
        %v451 = vunpack.c.l.b16 %v351
        %v452 = vunpack.c.h.b16 %v351
        %v453 = vunpack.c.l.b16 %v352
        %v454 = vunpack.c.h.b16 %v352
        %v455 = vpack.c.b16 %v393, %v391
        %v456 = vpack.c.b16 %v394, %v392
        %v457 = vpack.c.b16 %v397, %v395
        %v458 = vpack.c.b16 %v398, %v396
        %v459 = vpack.c.b16 %v401, %v399
        %v460 = vpack.c.b16 %v402, %v400
        %v461 = vpack.c.b16 %v405, %v403
        %v462 = vpack.c.b16 %v406, %v404
        %v463 = vpack.c.b16 %v409, %v407
        %v464 = vpack.c.b16 %v410, %v408
        %v465 = vpack.c.b16 %v413, %v411
        %v466 = vpack.c.b16 %v414, %v412
        %v467 = vpack.c.b16 %v417, %v415
        %v468 = vpack.c.b16 %v418, %v416
        %v469 = vpack.c.b16 %v421, %v419
        %v470 = vpack.c.b16 %v422, %v420
        %v471 = vpack.c.b16 %v425, %v423
        %v472 = vpack.c.b16 %v426, %v424
        %v473 = vpack.c.b16 %v429, %v427
        %v474 = vpack.c.b16 %v430, %v428
        %v475 = vpack.c.b16 %v433, %v431
        %v476 = vpack.c.b16 %v434, %v432
        %v477 = vpack.c.b16 %v437, %v435
        %v478 = vpack.c.b16 %v438, %v436
        %v479 = vpack.c.b16 %v441, %v439
        %v480 = vpack.c.b16 %v442, %v440
        %v481 = vpack.c.b16 %v445, %v443
        %v482 = vpack.c.b16 %v446, %v444
        %v483 = vpack.c.b16 %v449, %v447
        %v484 = vpack.c.b16 %v450, %v448
        %v485 = vpack.c.b16 %v453, %v451
        %v486 = vpack.c.b16 %v454, %v452
        %519 = vmatpush.bf16.msra.mxu0 %v469
        %520 = vmatpush.bf16.msra.mxu0 %v467
        %521 = vmatpush.bf16.msra.mxu0 %v465
        %522 = vmatpush.bf16.msra.mxu0 %v463
        %523 = vmatpush.bf16.msra.mxu0 %v461
        %524 = vmatpush.bf16.msra.mxu0 %v459
        %525 = vmatpush.bf16.msra.mxu0 %v457
        %526 = vmatpush.bf16.msra.mxu0 %v455
        %527 = vmatmul.bf16.gmra.mxu0 %v289
        %v528 = vpop.f32.mrf.mxu0
        %v529 = vadd.f32 %v355, %v528
        %v530 = vpop.f32.mrf.mxu0
        %v531 = vadd.f32 %v355, %v530
        %532 = vmatmul.bf16.gmra.mxu0 %v291
        %v533 = vpop.f32.mrf.mxu0
        %v534 = vadd.f32 %v355, %v533
        %v535 = vpop.f32.mrf.mxu0
        %v536 = vadd.f32 %v355, %v535
        %537 = vmatmul.bf16.gmra.mxu0 %v293
        %v538 = vpop.f32.mrf.mxu0
        %v539 = vadd.f32 %v355, %v538
        %v540 = vpop.f32.mrf.mxu0
        %v541 = vadd.f32 %v355, %v540
        %542 = vmatmul.bf16.gmra.mxu0 %v295
        %v543 = vpop.f32.mrf.mxu0
        %v544 = vadd.f32 %v355, %v543
        %v545 = vpop.f32.mrf.mxu0
        %v546 = vadd.f32 %v355, %v545
        %547 = vmatmul.bf16.gmra.mxu0 %v297
        %v548 = vpop.f32.mrf.mxu0
        %v549 = vadd.f32 %v355, %v548
        %v550 = vpop.f32.mrf.mxu0
        %v551 = vadd.f32 %v355, %v550
        %552 = vmatmul.bf16.gmra.mxu0 %v299
        %v553 = vpop.f32.mrf.mxu0
        %v554 = vadd.f32 %v355, %v553
        %v555 = vpop.f32.mrf.mxu0
        %v556 = vadd.f32 %v355, %v555
        %557 = vmatmul.bf16.gmra.mxu0 %v301
        %v558 = vpop.f32.mrf.mxu0
        %v559 = vadd.f32 %v355, %v558
        %v560 = vpop.f32.mrf.mxu0
        %v561 = vadd.f32 %v355, %v560
        %562 = vmatmul.bf16.gmra.mxu0 %v303
        %v563 = vpop.f32.mrf.mxu0
        %v564 = vadd.f32 %v355, %v563
        %v565 = vpop.f32.mrf.mxu0
        %v566 = vadd.f32 %v355, %v565
        %567 = vmatmul.bf16.gmra.mxu0 %v305
        %v568 = vpop.f32.mrf.mxu0
        %v569 = vadd.f32 %v355, %v568
        %v570 = vpop.f32.mrf.mxu0
        %v571 = vadd.f32 %v355, %v570
        %572 = vmatmul.bf16.gmra.mxu0 %v307
        %v573 = vpop.f32.mrf.mxu0
        %v574 = vadd.f32 %v355, %v573
        %v575 = vpop.f32.mrf.mxu0
        %v576 = vadd.f32 %v355, %v575
        %577 = vmatmul.bf16.gmra.mxu0 %v309
        %v578 = vpop.f32.mrf.mxu0
        %v579 = vadd.f32 %v355, %v578
        %v580 = vpop.f32.mrf.mxu0
        %v581 = vadd.f32 %v355, %v580
        %582 = vmatmul.bf16.gmra.mxu0 %v311
        %v583 = vpop.f32.mrf.mxu0
        %v584 = vadd.f32 %v355, %v583
        %v585 = vpop.f32.mrf.mxu0
        %v586 = vadd.f32 %v355, %v585
        %587 = vmatmul.bf16.gmra.mxu0 %v313
        %v588 = vpop.f32.mrf.mxu0
        %v589 = vadd.f32 %v355, %v588
        %v590 = vpop.f32.mrf.mxu0
        %v591 = vadd.f32 %v355, %v590
        %592 = vmatmul.bf16.gmra.mxu0 %v315
        %v593 = vpop.f32.mrf.mxu0
        %v594 = vadd.f32 %v355, %v593
        %v595 = vpop.f32.mrf.mxu0
        %v596 = vadd.f32 %v355, %v595
        %597 = vmatmul.bf16.gmra.mxu0 %v317
        %v598 = vpop.f32.mrf.mxu0
        %v599 = vadd.f32 %v355, %v598
        %v600 = vpop.f32.mrf.mxu0
        %v601 = vadd.f32 %v355, %v600
        %602 = vmatmul.bf16.gmra.mxu0 %v319
        %v603 = vpop.f32.mrf.mxu0
        %v604 = vadd.f32 %v355, %v603
        %v605 = vpop.f32.mrf.mxu0
        %v606 = vadd.f32 %v355, %v605
        %607 = vdwg.mxu0
        %608 = vmatpush.bf16.msra.mxu0 %v485
        %609 = vmatpush.bf16.msra.mxu0 %v483
        %610 = vmatpush.bf16.msra.mxu0 %v481
        %611 = vmatpush.bf16.msra.mxu0 %v479
        %612 = vmatpush.bf16.msra.mxu0 %v477
        %613 = vmatpush.bf16.msra.mxu0 %v475
        %614 = vmatpush.bf16.msra.mxu0 %v473
        %615 = vmatpush.bf16.msra.mxu0 %v471
        %616 = vmatmul.bf16.gmra.mxu0 %v290
        %v617 = vpop.f32.mrf.mxu0
        %v618 = vadd.f32 %v529, %v617
        %v619 = vpop.f32.mrf.mxu0
        %v620 = vadd.f32 %v531, %v619
        %621 = vmatmul.bf16.gmra.mxu0 %v292
        %v622 = vpop.f32.mrf.mxu0
        %v623 = vadd.f32 %v534, %v622
        %v624 = vpop.f32.mrf.mxu0
        %v625 = vadd.f32 %v536, %v624
        %626 = vmatmul.bf16.gmra.mxu0 %v294
        %v627 = vpop.f32.mrf.mxu0
        %v628 = vadd.f32 %v539, %v627
        %v629 = vpop.f32.mrf.mxu0
        %v630 = vadd.f32 %v541, %v629
        %631 = vmatmul.bf16.gmra.mxu0 %v296
        %v632 = vpop.f32.mrf.mxu0
        %v633 = vadd.f32 %v544, %v632
        %v634 = vpop.f32.mrf.mxu0
        %v635 = vadd.f32 %v546, %v634
        %636 = vmatmul.bf16.gmra.mxu0 %v298
        %v637 = vpop.f32.mrf.mxu0
        %v638 = vadd.f32 %v549, %v637
        %v639 = vpop.f32.mrf.mxu0
        %v640 = vadd.f32 %v551, %v639
        %641 = vmatmul.bf16.gmra.mxu0 %v300
        %v642 = vpop.f32.mrf.mxu0
        %v643 = vadd.f32 %v554, %v642
        %v644 = vpop.f32.mrf.mxu0
        %v645 = vadd.f32 %v556, %v644
        %646 = vmatmul.bf16.gmra.mxu0 %v302
        %v647 = vpop.f32.mrf.mxu0
        %v648 = vadd.f32 %v559, %v647
        %v649 = vpop.f32.mrf.mxu0
        %v650 = vadd.f32 %v561, %v649
        %651 = vmatmul.bf16.gmra.mxu0 %v304
        %v652 = vpop.f32.mrf.mxu0
        %v653 = vadd.f32 %v564, %v652
        %v654 = vpop.f32.mrf.mxu0
        %v655 = vadd.f32 %v566, %v654
        %656 = vmatmul.bf16.gmra.mxu0 %v306
        %v657 = vpop.f32.mrf.mxu0
        %v658 = vadd.f32 %v569, %v657
        %v659 = vpop.f32.mrf.mxu0
        %v660 = vadd.f32 %v571, %v659
        %661 = vmatmul.bf16.gmra.mxu0 %v308
        %v662 = vpop.f32.mrf.mxu0
        %v663 = vadd.f32 %v574, %v662
        %v664 = vpop.f32.mrf.mxu0
        %v665 = vadd.f32 %v576, %v664
        %666 = vmatmul.bf16.gmra.mxu0 %v310
        %v667 = vpop.f32.mrf.mxu0
        %v668 = vadd.f32 %v579, %v667
        %v669 = vpop.f32.mrf.mxu0
        %v670 = vadd.f32 %v581, %v669
        %671 = vmatmul.bf16.gmra.mxu0 %v312
        %v672 = vpop.f32.mrf.mxu0
        %v673 = vadd.f32 %v584, %v672
        %v674 = vpop.f32.mrf.mxu0
        %v675 = vadd.f32 %v586, %v674
        %676 = vmatmul.bf16.gmra.mxu0 %v314
        %v677 = vpop.f32.mrf.mxu0
        %v678 = vadd.f32 %v589, %v677
        %v679 = vpop.f32.mrf.mxu0
        %v680 = vadd.f32 %v591, %v679
        %681 = vmatmul.bf16.gmra.mxu0 %v316
        %v682 = vpop.f32.mrf.mxu0
        %v683 = vadd.f32 %v594, %v682
        %v684 = vpop.f32.mrf.mxu0
        %v685 = vadd.f32 %v596, %v684
        %686 = vmatmul.bf16.gmra.mxu0 %v318
        %v687 = vpop.f32.mrf.mxu0
        %v688 = vadd.f32 %v599, %v687
        %v689 = vpop.f32.mrf.mxu0
        %v690 = vadd.f32 %v601, %v689
        %691 = vmatmul.bf16.gmra.mxu0 %v320
        %v692 = vpop.f32.mrf.mxu0
        %v693 = vadd.f32 %v604, %v692
        %v694 = vpop.f32.mrf.mxu0
        %v695 = vadd.f32 %v606, %v694
        %696 = vdwg.mxu0
        %697 = vmatpush.bf16.msra.mxu0 %v470
        %698 = vmatpush.bf16.msra.mxu0 %v468
        %699 = vmatpush.bf16.msra.mxu0 %v466
        %700 = vmatpush.bf16.msra.mxu0 %v464
        %701 = vmatpush.bf16.msra.mxu0 %v462
        %702 = vmatpush.bf16.msra.mxu0 %v460
        %703 = vmatpush.bf16.msra.mxu0 %v458
        %704 = vmatpush.bf16.msra.mxu0 %v456
        %705 = vmatmul.bf16.gmra.mxu0 %v289
        %v706 = vpop.f32.mrf.mxu0
        %v707 = vadd.f32 %v356, %v706
        %v708 = vpop.f32.mrf.mxu0
        %v709 = vadd.f32 %v356, %v708
        %710 = vmatmul.bf16.gmra.mxu0 %v291
        %v711 = vpop.f32.mrf.mxu0
        %v712 = vadd.f32 %v356, %v711
        %v713 = vpop.f32.mrf.mxu0
        %v714 = vadd.f32 %v356, %v713
        %715 = vmatmul.bf16.gmra.mxu0 %v293
        %v716 = vpop.f32.mrf.mxu0
        %v717 = vadd.f32 %v356, %v716
        %v718 = vpop.f32.mrf.mxu0
        %v719 = vadd.f32 %v356, %v718
        %720 = vmatmul.bf16.gmra.mxu0 %v295
        %v721 = vpop.f32.mrf.mxu0
        %v722 = vadd.f32 %v356, %v721
        %v723 = vpop.f32.mrf.mxu0
        %v724 = vadd.f32 %v356, %v723
        %725 = vmatmul.bf16.gmra.mxu0 %v297
        %v726 = vpop.f32.mrf.mxu0
        %v727 = vadd.f32 %v356, %v726
        %v728 = vpop.f32.mrf.mxu0
        %v729 = vadd.f32 %v356, %v728
        %730 = vmatmul.bf16.gmra.mxu0 %v299
        %v731 = vpop.f32.mrf.mxu0
        %v732 = vadd.f32 %v356, %v731
        %v733 = vpop.f32.mrf.mxu0
        %v734 = vadd.f32 %v356, %v733
        %735 = vmatmul.bf16.gmra.mxu0 %v301
        %v736 = vpop.f32.mrf.mxu0
        %v737 = vadd.f32 %v356, %v736
        %v738 = vpop.f32.mrf.mxu0
        %v739 = vadd.f32 %v356, %v738
        %740 = vmatmul.bf16.gmra.mxu0 %v303
        %v741 = vpop.f32.mrf.mxu0
        %v742 = vadd.f32 %v356, %v741
        %v743 = vpop.f32.mrf.mxu0
        %v744 = vadd.f32 %v356, %v743
        %745 = vmatmul.bf16.gmra.mxu0 %v305
        %v746 = vpop.f32.mrf.mxu0
        %v747 = vadd.f32 %v356, %v746
        %v748 = vpop.f32.mrf.mxu0
        %v749 = vadd.f32 %v356, %v748
        %750 = vmatmul.bf16.gmra.mxu0 %v307
        %v751 = vpop.f32.mrf.mxu0
        %v752 = vadd.f32 %v356, %v751
        %v753 = vpop.f32.mrf.mxu0
        %v754 = vadd.f32 %v356, %v753
        %755 = vmatmul.bf16.gmra.mxu0 %v309
        %v756 = vpop.f32.mrf.mxu0
        %v757 = vadd.f32 %v356, %v756
        %v758 = vpop.f32.mrf.mxu0
        %v759 = vadd.f32 %v356, %v758
        %760 = vmatmul.bf16.gmra.mxu0 %v311
        %v761 = vpop.f32.mrf.mxu0
        %v762 = vadd.f32 %v356, %v761
        %v763 = vpop.f32.mrf.mxu0
        %v764 = vadd.f32 %v356, %v763
        %765 = vmatmul.bf16.gmra.mxu0 %v313
        %v766 = vpop.f32.mrf.mxu0
        %v767 = vadd.f32 %v356, %v766
        %v768 = vpop.f32.mrf.mxu0
        %v769 = vadd.f32 %v356, %v768
        %770 = vmatmul.bf16.gmra.mxu0 %v315
        %v771 = vpop.f32.mrf.mxu0
        %v772 = vadd.f32 %v356, %v771
        %v773 = vpop.f32.mrf.mxu0
        %v774 = vadd.f32 %v356, %v773
        %775 = vmatmul.bf16.gmra.mxu0 %v317
        %v776 = vpop.f32.mrf.mxu0
        %v777 = vadd.f32 %v356, %v776
        %v778 = vpop.f32.mrf.mxu0
        %v779 = vadd.f32 %v356, %v778
        %780 = vmatmul.bf16.gmra.mxu0 %v319
        %v781 = vpop.f32.mrf.mxu0
        %v782 = vadd.f32 %v356, %v781
        %v783 = vpop.f32.mrf.mxu0
        %v784 = vadd.f32 %v356, %v783
        %785 = vdwg.mxu0
        %786 = vmatpush.bf16.msra.mxu0 %v486
        %787 = vmatpush.bf16.msra.mxu0 %v484
        %788 = vmatpush.bf16.msra.mxu0 %v482
        %789 = vmatpush.bf16.msra.mxu0 %v480
        %790 = vmatpush.bf16.msra.mxu0 %v478
        %791 = vmatpush.bf16.msra.mxu0 %v476
        %792 = vmatpush.bf16.msra.mxu0 %v474
        %793 = vmatpush.bf16.msra.mxu0 %v472
        %794 = vmatmul.bf16.gmra.mxu0 %v290
        %v795 = vpop.f32.mrf.mxu0
        %v796 = vadd.f32 %v707, %v795
        %v797 = vpop.f32.mrf.mxu0
        %v798 = vadd.f32 %v709, %v797
        %799 = vmatmul.bf16.gmra.mxu0 %v292
        %v800 = vpop.f32.mrf.mxu0
        %v801 = vadd.f32 %v712, %v800
        %v802 = vpop.f32.mrf.mxu0
        %v803 = vadd.f32 %v714, %v802
        %804 = vmatmul.bf16.gmra.mxu0 %v294
        %v805 = vpop.f32.mrf.mxu0
        %v806 = vadd.f32 %v717, %v805
        %v807 = vpop.f32.mrf.mxu0
        %v808 = vadd.f32 %v719, %v807
        %809 = vmatmul.bf16.gmra.mxu0 %v296
        %v810 = vpop.f32.mrf.mxu0
        %v811 = vadd.f32 %v722, %v810
        %v812 = vpop.f32.mrf.mxu0
        %v813 = vadd.f32 %v724, %v812
        %814 = vmatmul.bf16.gmra.mxu0 %v298
        %v815 = vpop.f32.mrf.mxu0
        %v816 = vadd.f32 %v727, %v815
        %v817 = vpop.f32.mrf.mxu0
        %v818 = vadd.f32 %v729, %v817
        %819 = vmatmul.bf16.gmra.mxu0 %v300
        %v820 = vpop.f32.mrf.mxu0
        %v821 = vadd.f32 %v732, %v820
        %v822 = vpop.f32.mrf.mxu0
        %v823 = vadd.f32 %v734, %v822
        %824 = vmatmul.bf16.gmra.mxu0 %v302
        %v825 = vpop.f32.mrf.mxu0
        %v826 = vadd.f32 %v737, %v825
        %v827 = vpop.f32.mrf.mxu0
        %v828 = vadd.f32 %v739, %v827
        %829 = vmatmul.bf16.gmra.mxu0 %v304
        %v830 = vpop.f32.mrf.mxu0
        %v831 = vadd.f32 %v742, %v830
        %v832 = vpop.f32.mrf.mxu0
        %v833 = vadd.f32 %v744, %v832
        %834 = vmatmul.bf16.gmra.mxu0 %v306
        %v835 = vpop.f32.mrf.mxu0
        %v836 = vadd.f32 %v747, %v835
        %v837 = vpop.f32.mrf.mxu0
        %v838 = vadd.f32 %v749, %v837
        %839 = vmatmul.bf16.gmra.mxu0 %v308
        %v840 = vpop.f32.mrf.mxu0
        %v841 = vadd.f32 %v752, %v840
        %v842 = vpop.f32.mrf.mxu0
        %v843 = vadd.f32 %v754, %v842
        %844 = vmatmul.bf16.gmra.mxu0 %v310
        %v845 = vpop.f32.mrf.mxu0
        %v846 = vadd.f32 %v757, %v845
        %v847 = vpop.f32.mrf.mxu0
        %v848 = vadd.f32 %v759, %v847
        %849 = vmatmul.bf16.gmra.mxu0 %v312
        %v850 = vpop.f32.mrf.mxu0
        %v851 = vadd.f32 %v762, %v850
        %v852 = vpop.f32.mrf.mxu0
        %v853 = vadd.f32 %v764, %v852
        %854 = vmatmul.bf16.gmra.mxu0 %v314
        %v855 = vpop.f32.mrf.mxu0
        %v856 = vadd.f32 %v767, %v855
        %v857 = vpop.f32.mrf.mxu0
        %v858 = vadd.f32 %v769, %v857
        %859 = vmatmul.bf16.gmra.mxu0 %v316
        %v860 = vpop.f32.mrf.mxu0
        %v861 = vadd.f32 %v772, %v860
        %v862 = vpop.f32.mrf.mxu0
        %v863 = vadd.f32 %v774, %v862
        %864 = vmatmul.bf16.gmra.mxu0 %v318
        %v865 = vpop.f32.mrf.mxu0
        %v866 = vadd.f32 %v777, %v865
        %v867 = vpop.f32.mrf.mxu0
        %v868 = vadd.f32 %v779, %v867
        %869 = vmatmul.bf16.gmra.mxu0 %v320
        %v870 = vpop.f32.mrf.mxu0
        %v871 = vadd.f32 %v782, %v870
        %v872 = vpop.f32.mrf.mxu0
        %v873 = vadd.f32 %v784, %v872
        %874 = vdwg.mxu0
        %875 = vst [vmem:[%s222] sm:$0xff] %v618
        %876 = vst [vmem:[%s222 + $0x8] sm:$0xff] %v796
        %877 = vst [vmem:[%s222 + $0x10] sm:$0xff] %v620
        %878 = vst [vmem:[%s222 + $0x18] sm:$0xff] %v798
        %879 = vst [vmem:[%s222 + $0x20] sm:$0xff] %v623
        %880 = vst [vmem:[%s222 + $0x28] sm:$0xff] %v801
        %881 = vst [vmem:[%s222 + $0x30] sm:$0xff] %v625
        %882 = vst [vmem:[%s222 + $0x38] sm:$0xff] %v803
        %883 = vst [vmem:[%s222 + $0x40] sm:$0xff] %v628
        %884 = vst [vmem:[%s222 + $0x48] sm:$0xff] %v806
        %885 = vst [vmem:[%s222 + $0x50] sm:$0xff] %v630
        %886 = vst [vmem:[%s222 + $0x58] sm:$0xff] %v808
        %887 = vst [vmem:[%s222 + $0x60] sm:$0xff] %v633
        %888 = vst [vmem:[%s222 + $0x68] sm:$0xff] %v811
        %889 = vst [vmem:[%s222 + $0x70] sm:$0xff] %v635
        %890 = vst [vmem:[%s222 + $0x78] sm:$0xff] %v813
        %891 = vst [vmem:[%s222 + $0x80] sm:$0xff] %v638
        %892 = vst [vmem:[%s222 + $0x88] sm:$0xff] %v816
        %893 = vst [vmem:[%s222 + $0x90] sm:$0xff] %v640
        %894 = vst [vmem:[%s222 + $0x98] sm:$0xff] %v818
        %895 = vst [vmem:[%s222 + $0xa0] sm:$0xff] %v643
        %896 = vst [vmem:[%s222 + $0xa8] sm:$0xff] %v821
        %897 = vst [vmem:[%s222 + $0xb0] sm:$0xff] %v645
        %898 = vst [vmem:[%s222 + $0xb8] sm:$0xff] %v823
        %899 = vst [vmem:[%s222 + $0xc0] sm:$0xff] %v648
        %900 = vst [vmem:[%s222 + $0xc8] sm:$0xff] %v826
        %901 = vst [vmem:[%s222 + $0xd0] sm:$0xff] %v650
        %902 = vst [vmem:[%s222 + $0xd8] sm:$0xff] %v828
        %903 = vst [vmem:[%s222 + $0xe0] sm:$0xff] %v653
        %904 = vst [vmem:[%s222 + $0xe8] sm:$0xff] %v831
        %905 = vst [vmem:[%s222 + $0xf0] sm:$0xff] %v655
        %906 = vst [vmem:[%s222 + $0xf8] sm:$0xff] %v833
        %907 = vst [vmem:[%s222 + $0x100] sm:$0xff] %v658
        %908 = vst [vmem:[%s222 + $0x108] sm:$0xff] %v836
        %909 = vst [vmem:[%s222 + $0x110] sm:$0xff] %v660
        %910 = vst [vmem:[%s222 + $0x118] sm:$0xff] %v838
        %911 = vst [vmem:[%s222 + $0x120] sm:$0xff] %v663
        %912 = vst [vmem:[%s222 + $0x128] sm:$0xff] %v841
        %913 = vst [vmem:[%s222 + $0x130] sm:$0xff] %v665
        %914 = vst [vmem:[%s222 + $0x138] sm:$0xff] %v843
        %915 = vst [vmem:[%s222 + $0x140] sm:$0xff] %v668
        %916 = vst [vmem:[%s222 + $0x148] sm:$0xff] %v846
        %917 = vst [vmem:[%s222 + $0x150] sm:$0xff] %v670
        %918 = vst [vmem:[%s222 + $0x158] sm:$0xff] %v848
        %919 = vst [vmem:[%s222 + $0x160] sm:$0xff] %v673
        %920 = vst [vmem:[%s222 + $0x168] sm:$0xff] %v851
        %921 = vst [vmem:[%s222 + $0x170] sm:$0xff] %v675
        %922 = vst [vmem:[%s222 + $0x178] sm:$0xff] %v853
        %923 = vst [vmem:[%s222 + $0x180] sm:$0xff] %v678
        %924 = vst [vmem:[%s222 + $0x188] sm:$0xff] %v856
        %925 = vst [vmem:[%s222 + $0x190] sm:$0xff] %v680
        %926 = vst [vmem:[%s222 + $0x198] sm:$0xff] %v858
        %927 = vst [vmem:[%s222 + $0x1a0] sm:$0xff] %v683
        %928 = vst [vmem:[%s222 + $0x1a8] sm:$0xff] %v861
        %929 = vst [vmem:[%s222 + $0x1b0] sm:$0xff] %v685
        %930 = vst [vmem:[%s222 + $0x1b8] sm:$0xff] %v863
        %931 = vst [vmem:[%s222 + $0x1c0] sm:$0xff] %v688
        %932 = vst [vmem:[%s222 + $0x1c8] sm:$0xff] %v866
        %933 = vst [vmem:[%s222 + $0x1d0] sm:$0xff] %v690
        %934 = vst [vmem:[%s222 + $0x1d8] sm:$0xff] %v868
        %935 = vst [vmem:[%s222 + $0x1e0] sm:$0xff] %v693
        %936 = vst [vmem:[%s222 + $0x1e8] sm:$0xff] %v871
        %937 = vst [vmem:[%s222 + $0x1f0] sm:$0xff] %v695
        %938 = vst [vmem:[%s222 + $0x1f8] sm:$0xff] %v873
        %s939 = sand.u32 %s97, 1
        %s940 = scalar_lea.sflag [#allocation4], %s939
        %s941 = sand.u32 %s97, 1
        %s942 = smul.addr %s941, 512
        %s943 = scalar_lea.vmem [#allocation8], %s942
        // Predicated region
        $region45: #{tpu_custom_call.1} parent=31 // pred_check
          %p944 = pneg %p107
        $region46: #{tpu_custom_call.1} parent=31 // pred_check_branch
          %946 = sbr.rel (%p944) target = $region48
        $region47: #{tpu_custom_call.1} parent=31 // pred_region
          %s947 = smul.u32 32, %s21
          %949 = vsyncadd %s940, 0
          %s950 = smul.addr %s947, 2
          %s951 = smul.addr %s950, 8
          %s952 = scalar_lea.hbm %s3, %s951
          %s953 = sshll.u32 %s943, 4
          %s954 = int_to_ptr.vmem [resolvable:$true] %s953
          %s955 = sshll.u32 %s952, 4
          %s956 = int_to_ptr.hbm [resolvable:$true] %s955
          %961 = dma.vmem_to_hbm [thread:$0]  %s954, 8192, %s956, %s940, 256, 256, 16
        $region48: #{tpu_custom_call.1} parent=31 // pred_fallthru
          _
      $region32: #{tpu_custom_call.1} parent=5 // pred_fallthru
        _
      %p962 = scmp.le.s32.totalorder 2, %s16
      // Predicated region
      $region49: #{tpu_custom_call.1} parent=5 // pred_check
        %p963 = pneg %p962
      $region50: #{tpu_custom_call.1} parent=5 // pred_check_branch
        %965 = sbr.rel (%p963) target = $region52
      $region51: #{tpu_custom_call.1} parent=5 // pred_region
        %s966 = ssub.s32 %s16, 2
        // Predicated region
        $region53: #{tpu_custom_call.1} parent=51 // pred_check
          %p967 = pneg %p113
        $region54: #{tpu_custom_call.1} parent=51 // pred_check_branch
          %969 = sbr.rel (%p967) target = $region56
        $region55: #{tpu_custom_call.1} parent=51 // pred_region
          %s970 = sand.u32 %s98, 1
          %s971 = scalar_lea.sflag [#allocation4], %s970
          %s972 = sand.u32 %s98, 1
          %s973 = smul.addr %s972, 512
          %s974 = scalar_lea.vmem [#allocation8], %s973
          %976 = dma.done %s971, 8192
        $region56: #{tpu_custom_call.1} parent=51 // pred_fallthru
          _
      $region52: #{tpu_custom_call.1} parent=5 // pred_fallthru
        _
    $region6: #{tpu_custom_call.1} parent=1 // loop_footer
      %s20 = sadd.s32 1, %s16
    $region7: #{tpu_custom_call.1} parent=1 // loop_footer_branch
      %15 = sbr.rel target = $region3
    $region8: #{tpu_custom_call.1} parent=1 // loop_exit
      _
    %977 = vsyncpa [#allocation3], 1
    %s978 = scalar_lea.sflag [#allocation3], 1
    %979 = vsyncpa %s978, 1
    %980 = vsyncpa [#allocation6], 1
    %981 = vsyncpa [#allocation4], 1
    %s982 = scalar_lea.sflag [#allocation4], 1
    %983 = vsyncpa %s982, 1

</llo_original>
